<compile_context>
chip_gen: v5e
topology: v5e:2x2
jax: 0.10.0
libtpu: 0.0.40
codegen_flags: <defaults>
</compile_context>

<pallas_src>
import functools

import jax
import jax.numpy as jnp
from jax.experimental import pallas as pl
from jax.experimental.pallas import tpu as pltpu

_LANE = 128
_SUBLANE = 8
_FUSED_BLOCK_CAP = 8 * 1024 * 1024    # max x-block bytes per grid step (fused path)
_SCALE_BLOCK_CAP = 4 * 1024 * 1024    # max x-block bytes per grid step (scale path)
_MAX_TN = 16                          # static unroll bound: images per grid step


def _largest_divisor_leq(n, cap):
    cap = max(1, min(n, cap))
    for d in range(cap, 0, -1):
        if n % d == 0:
            return d
    return 1


def _vmem_limit_for(block_bytes):
    # x block + out block, each double-buffered, plus slack for weights/scalars.
    need = 4 * block_bytes + 2 * 1024 * 1024
    return int(min(100 * 1024 * 1024, max(16 * 1024 * 1024, need)))


# -----------------------------------------------------------------------------
# Fused kernel: pool + squeeze/excite + scale for TN batch elements per step.
# Everything stays in column layout ((C,1) vectors) so no lane<->sublane
# relayouts are needed; the kernel is fully hidden under the HBM stream.
# -----------------------------------------------------------------------------
def _ca_fused_kernel(x_ref, w1_ref, b1_ref, w2_ref, b2_ref, o_ref, *, inv_hw, tn):
    # x_ref/o_ref: (TN, C, HW)  w1: (Cr, C)  b1: (Cr, 1)  w2: (C, Cr)  b2: (C, 1)
    w1 = w1_ref[...]
    b1 = b1_ref[...]
    w2 = w2_ref[...]
    b2 = b2_ref[...]

    for n in range(tn):                 # static unroll, tn <= _MAX_TN
        xn = x_ref[n]                                                        # (C, HW)
        # Exact spatial mean (no padding -> no correction needed); f32 accum.
        pooled = jnp.sum(xn.astype(jnp.float32), axis=-1,
                         keepdims=True) * inv_hw                             # (C, 1)
        h = jnp.dot(w1, pooled, preferred_element_type=jnp.float32) + b1     # (Cr, 1)
        h = jnp.maximum(h, 0.0)                                              # ReLU
        y = jnp.dot(w2, h, preferred_element_type=jnp.float32) + b2          # (C, 1)
        y = jax.nn.sigmoid(y)                                                # Sigmoid
        o_ref[n] = xn * y.astype(o_ref.dtype)      # broadcast over spatial lanes


# -----------------------------------------------------------------------------
# Streaming scale kernel for the two-pass path: out = x * y (y is per (n, c)).
# -----------------------------------------------------------------------------
def _ca_scale_kernel(x_ref, y_ref, o_ref):
    # x_ref/o_ref: (1, tc, HW)   y_ref: (1, tc, 1)
    o_ref[...] = x_ref[...] * y_ref[...]


def ca_layer(x_nchw, w1, b1, w2, b2, *, force_two_pass=False):
    """CALayer forward.  x_nchw: (N, C, H, W).  Weights follow PyTorch Conv2d
    1x1 shapes squeezed: w1 (C//8, C), b1 (C//8,), w2 (C, C//8), b2 (C,)."""
    N, C, H, W = x_nchw.shape
    Cr = w1.shape[0]
    HW = H * W
    itemsize = jnp.dtype(x_nchw.dtype).itemsize

    x = x_nchw.reshape(N, C, HW)
    per_image_bytes = C * HW * itemsize
    use_fused = (not force_two_pass) and per_image_bytes <= _FUSED_BLOCK_CAP

    if use_fused:
        # Largest image count per step that divides N and fits the block budget.
        tn = _largest_divisor_leq(
            N, min(_MAX_TN, _FUSED_BLOCK_CAP // per_image_bytes))
        block_bytes = tn * per_image_bytes
        grid = (N // tn,)

        cost = pl.CostEstimate(
            flops=int(3 * N * C * HW + 4 * N * C * Cr),
            transcendentals=int(N * C),
            bytes_accessed=int(2 * N * C * HW * itemsize + (2 * C * Cr + C + Cr) * 4),
        )
        out = pl.pallas_call(
            functools.partial(_ca_fused_kernel, inv_hw=1.0 / HW, tn=tn),
            out_shape=jax.ShapeDtypeStruct((N, C, HW), x.dtype),
            grid_spec=pltpu.PrefetchScalarGridSpec(
                num_scalar_prefetch=0,
                grid=grid,
                in_specs=[
                    pl.BlockSpec((tn, C, HW), lambda i: (i, 0, 0)),
                    pl.BlockSpec((Cr, C), lambda i: (0, 0)),
                    pl.BlockSpec((Cr, 1), lambda i: (0, 0)),
                    pl.BlockSpec((C, Cr), lambda i: (0, 0)),
                    pl.BlockSpec((C, 1), lambda i: (0, 0)),
                ],
                out_specs=pl.BlockSpec((tn, C, HW), lambda i: (i, 0, 0)),
            ),
            compiler_params=pltpu.CompilerParams(
                dimension_semantics=("parallel",),
                vmem_limit_bytes=_vmem_limit_for(block_bytes)),
            cost_estimate=cost,
        )(x, w1, b1.reshape(Cr, 1), w2, b2.reshape(C, 1))
    else:
        # Two-pass: pooled + squeeze/excite is O(N*C) work -> plain XLA; the
        # HBM-bound x * y scale streams through a channel-tiled kernel.
        pooled = jnp.mean(x.astype(jnp.float32), axis=-1)                   # (N, C)
        h = jnp.maximum(pooled @ w1.T.astype(jnp.float32)
                        + b1[None, :].astype(jnp.float32), 0.0)             # (N, Cr)
        yv = jax.nn.sigmoid(h @ w2.T.astype(jnp.float32)
                            + b2[None, :].astype(jnp.float32))              # (N, C)
        y3 = yv.astype(x.dtype)[:, :, None]                                 # (N, C, 1)

        # Channel tile: multiple of 8 that divides C, full HW rows on lanes.
        row_bytes = HW * itemsize
        if C % _SUBLANE == 0:
            groups = C // _SUBLANE
            g_cap = max(1, _SCALE_BLOCK_CAP // (_SUBLANE * row_bytes))
            tc = _largest_divisor_leq(groups, g_cap) * _SUBLANE
        else:
            # TODO(synk): add spatial tiling fallback for C not a multiple of 8.
            tc = C
        block_bytes = tc * row_bytes
        grid = (N, C // tc)

        cost = pl.CostEstimate(
            flops=int(N * C * HW),
            transcendentals=0,
            bytes_accessed=int(2 * N * C * HW * itemsize),
        )
        out = pl.pallas_call(
            _ca_scale_kernel,
            out_shape=jax.ShapeDtypeStruct((N, C, HW), x.dtype),
            grid_spec=pltpu.PrefetchScalarGridSpec(
                num_scalar_prefetch=0,
                grid=grid,
                in_specs=[
                    pl.BlockSpec((1, tc, HW), lambda n, j: (n, j, 0)),
                    pl.BlockSpec((1, tc, 1), lambda n, j: (n, j, 0)),
                ],
                out_specs=pl.BlockSpec((1, tc, HW), lambda n, j: (n, j, 0)),
            ),
            compiler_params=pltpu.CompilerParams(
                dimension_semantics=("parallel", "parallel"),
                vmem_limit_bytes=_vmem_limit_for(block_bytes)),
            cost_estimate=cost,
        )(x, y3)

    return out.reshape(N, C, H, W)


def ca_layer_ref(x, w1, b1, w2, b2):
    # pure-JAX reference mirroring the PyTorch module
    pooled = jnp.mean(x, axis=(2, 3), keepdims=True)                        # (N, C, 1, 1)
    h = jnp.einsum('oc,ncij->noij', w1, pooled) + b1[None, :, None, None]
    h = jnp.maximum(h, 0.0)
    y = jnp.einsum('oc,ncij->noij', w2, h) + b2[None, :, None, None]
    y = jax.nn.sigmoid(y)
    return x * y


if __name__ == "__main__":
    key = jax.random.PRNGKey(0)
    N, C, H, W = 2, 32, 16, 16          # channel // 8 == 4
    Cr = C // 8

    kx, k1, k2, k3, k4, k5 = jax.random.split(key, 6)
    x = jax.random.normal(kx, (N, C, H, W), dtype=jnp.float32)
    # deterministic synthetic parameters (Conv2d 1x1 weights squeezed to 2-D)
    w1 = 0.1 * jax.random.normal(k1, (Cr, C), dtype=jnp.float32)
    b1 = 0.1 * jax.random.normal(k2, (Cr,), dtype=jnp.float32)
    w2 = 0.1 * jax.random.normal(k3, (C, Cr), dtype=jnp.float32)
    b2 = 0.1 * jax.random.normal(k4, (C,), dtype=jnp.float32)

    ref = ca_layer_ref(x, w1, b1, w2, b2)

    # Fused single-pass path (both images in one grid step).
    out = jax.block_until_ready(ca_layer(x, w1, b1, w2, b2))
    assert out.shape == (N, C, H, W)
    assert jnp.allclose(out, ref, atol=1e-5, rtol=1e-5)

    # Two-pass streaming path (forced here; chosen automatically when the
    # per-image (C, HW) slab would blow the VMEM block budget).
    out2 = jax.block_until_ready(ca_layer(x, w1, b1, w2, b2, force_two_pass=True))
    assert jnp.allclose(out2, ref, atol=1e-5, rtol=1e-5)

    # Non-multiple-of-128 spatial size: exercises the unpadded full-HW blocks
    # (masked remainder stores, exact true-HW mean).
    x_odd = jax.random.normal(k5, (3, C, 14, 14), dtype=jnp.float32)
    out3 = jax.block_until_ready(ca_layer(x_odd, w1, b1, w2, b2))
    assert jnp.allclose(out3, ca_layer_ref(x_odd, w1, b1, w2, b2),
                        atol=1e-5, rtol=1e-5)

    print("KERNEL_OK")
</pallas_src>

<mosaic_0001>
module attributes {stable_mosaic.version = 11 : i64} {
  func.func @_ca_fused_kernel(%arg0: i32, %arg1: memref<2x32x256xf32, #tpu.memory_space<vmem>>, %arg2: memref<4x32xf32, #tpu.memory_space<vmem>>, %arg3: memref<4x1xf32, #tpu.memory_space<vmem>>, %arg4: memref<32x4xf32, #tpu.memory_space<vmem>>, %arg5: memref<32x1xf32, #tpu.memory_space<vmem>>, %arg6: memref<2x32x256xf32, #tpu.memory_space<vmem>>) attributes {dimension_semantics = [#tpu.dimension_semantics<parallel>], iteration_bounds = array<i64: 1>, scalar_prefetch = 0 : i64, scratch_operands = 0 : i64, tpu.core_type = #tpu.core_type<tc>, window_params = [{transform_indices = @transform_0, window_bounds = array<i64: 2, 32, 256>}, {pipeline_mode = #tpu.pipeline_mode<synchronous>, transform_indices = @transform_1, window_bounds = array<i64: 4, 32>}, {pipeline_mode = #tpu.pipeline_mode<synchronous>, transform_indices = @transform_2, window_bounds = array<i64: 4, 1>}, {pipeline_mode = #tpu.pipeline_mode<synchronous>, transform_indices = @transform_3, window_bounds = array<i64: 32, 4>}, {pipeline_mode = #tpu.pipeline_mode<synchronous>, transform_indices = @transform_4, window_bounds = array<i64: 32, 1>}, {transform_indices = @transform_5, window_bounds = array<i64: 2, 32, 256>}]} {
    %c0 = arith.constant 0 : index
    %c0_0 = arith.constant 0 : index
    %0 = vector.load %arg2[%c0, %c0_0] : memref<4x32xf32, #tpu.memory_space<vmem>>, vector<4x32xf32>
    %c0_1 = arith.constant 0 : index
    %c0_2 = arith.constant 0 : index
    %1 = vector.load %arg3[%c0_1, %c0_2] : memref<4x1xf32, #tpu.memory_space<vmem>>, vector<4x1xf32>
    %c0_3 = arith.constant 0 : index
    %c0_4 = arith.constant 0 : index
    %2 = vector.load %arg4[%c0_3, %c0_4] : memref<32x4xf32, #tpu.memory_space<vmem>>, vector<32x4xf32>
    %c0_5 = arith.constant 0 : index
    %c0_6 = arith.constant 0 : index
    %3 = vector.load %arg5[%c0_5, %c0_6] : memref<32x1xf32, #tpu.memory_space<vmem>>, vector<32x1xf32>
    %c0_7 = arith.constant 0 : index
    %c0_8 = arith.constant 0 : index
    %c0_9 = arith.constant 0 : index
    %4 = vector.load %arg1[%c0_7, %c0_8, %c0_9] : memref<2x32x256xf32, #tpu.memory_space<vmem>>, vector<1x32x256xf32>
    %5 = vector.shape_cast %4 : vector<1x32x256xf32> to vector<32x256xf32>
    %cst = arith.constant dense<0.000000e+00> : vector<32xf32>
    %6 = vector.multi_reduction <add>, %5, %cst [1] : vector<32x256xf32> to vector<32xf32>
    %7 = vector.shape_cast %6 : vector<32xf32> to vector<32x1xf32>
    %cst_10 = arith.constant 3.906250e-03 : f32
    %8 = vector.broadcast %cst_10 : f32 to vector<32x1xf32>
    %9 = arith.mulf %7, %8 : vector<32x1xf32>
    %cst_11 = arith.constant dense<0.000000e+00> : vector<4x1xf32>
    %10 = tpu.matmul %0, %9, %cst_11 {dimension_numbers = #tpu.dot_dimension_numbers<[1], [0], [0], [1], [0, 0, 1, 1], [], []>} : vector<4x32xf32>, vector<32x1xf32>, vector<4x1xf32> -> vector<4x1xf32>
    %11 = arith.addf %10, %1 : vector<4x1xf32>
    %cst_12 = arith.constant 0.000000e+00 : f32
    %12 = vector.broadcast %cst_12 : f32 to vector<4x1xf32>
    %13 = arith.maximumf %11, %12 : vector<4x1xf32>
    %cst_13 = arith.constant dense<0.000000e+00> : vector<32x1xf32>
    %14 = tpu.matmul %2, %13, %cst_13 {dimension_numbers = #tpu.dot_dimension_numbers<[1], [0], [0], [1], [0, 0, 1, 1], [], []>} : vector<32x4xf32>, vector<4x1xf32>, vector<32x1xf32> -> vector<32x1xf32>
    %15 = arith.addf %14, %3 : vector<32x1xf32>
    %16 = arith.negf %15 : vector<32x1xf32>
    %17 = math.exp %16 : vector<32x1xf32>
    %cst_14 = arith.constant 1.000000e+00 : f32
    %18 = vector.broadcast %cst_14 : f32 to vector<32x1xf32>
    %19 = arith.addf %18, %17 : vector<32x1xf32>
    %20 = arith.divf %18, %19 : vector<32x1xf32>
    %21 = vector.broadcast %20 : vector<32x1xf32> to vector<32x256xf32>
    %22 = arith.mulf %5, %21 : vector<32x256xf32>
    %c0_15 = arith.constant 0 : index
    %c0_16 = arith.constant 0 : index
    %c0_17 = arith.constant 0 : index
    %23 = vector.load %arg6[%c0_15, %c0_16, %c0_17] : memref<2x32x256xf32, #tpu.memory_space<vmem>>, vector<1x32x256xf32>
    %24 = vector.shape_cast %23 : vector<1x32x256xf32> to vector<32x256xf32>
    %25 = vector.shape_cast %22 : vector<32x256xf32> to vector<1x32x256xf32>
    tpu.vector_store %arg6[%c0_15, %c0_16, %c0_17], %25 {strides = array<i32>} : memref<2x32x256xf32, #tpu.memory_space<vmem>>, vector<1x32x256xf32>,
    %c1 = arith.constant 1 : index
    %c0_18 = arith.constant 0 : index
    %c0_19 = arith.constant 0 : index
    %26 = vector.load %arg1[%c1, %c0_18, %c0_19] : memref<2x32x256xf32, #tpu.memory_space<vmem>>, vector<1x32x256xf32>
    %27 = vector.shape_cast %26 : vector<1x32x256xf32> to vector<32x256xf32>
    %cst_20 = arith.constant dense<0.000000e+00> : vector<32xf32>
    %28 = vector.multi_reduction <add>, %27, %cst_20 [1] : vector<32x256xf32> to vector<32xf32>
    %29 = vector.shape_cast %28 : vector<32xf32> to vector<32x1xf32>
    %cst_21 = arith.constant 3.906250e-03 : f32
    %30 = vector.broadcast %cst_21 : f32 to vector<32x1xf32>
    %31 = arith.mulf %29, %30 : vector<32x1xf32>
    %cst_22 = arith.constant dense<0.000000e+00> : vector<4x1xf32>
    %32 = tpu.matmul %0, %31, %cst_22 {dimension_numbers = #tpu.dot_dimension_numbers<[1], [0], [0], [1], [0, 0, 1, 1], [], []>} : vector<4x32xf32>, vector<32x1xf32>, vector<4x1xf32> -> vector<4x1xf32>
    %33 = arith.addf %32, %1 : vector<4x1xf32>
    %cst_23 = arith.constant 0.000000e+00 : f32
    %34 = vector.broadcast %cst_23 : f32 to vector<4x1xf32>
    %35 = arith.maximumf %33, %34 : vector<4x1xf32>
    %cst_24 = arith.constant dense<0.000000e+00> : vector<32x1xf32>
    %36 = tpu.matmul %2, %35, %cst_24 {dimension_numbers = #tpu.dot_dimension_numbers<[1], [0], [0], [1], [0, 0, 1, 1], [], []>} : vector<32x4xf32>, vector<4x1xf32>, vector<32x1xf32> -> vector<32x1xf32>
    %37 = arith.addf %36, %3 : vector<32x1xf32>
    %38 = arith.negf %37 : vector<32x1xf32>
    %39 = math.exp %38 : vector<32x1xf32>
    %cst_25 = arith.constant 1.000000e+00 : f32
    %40 = vector.broadcast %cst_25 : f32 to vector<32x1xf32>
    %41 = arith.addf %40, %39 : vector<32x1xf32>
    %42 = arith.divf %40, %41 : vector<32x1xf32>
    %43 = vector.broadcast %42 : vector<32x1xf32> to vector<32x256xf32>
    %44 = arith.mulf %27, %43 : vector<32x256xf32>
    %c1_26 = arith.constant 1 : index
    %c0_27 = arith.constant 0 : index
    %c0_28 = arith.constant 0 : index
    %45 = vector.load %arg6[%c1_26, %c0_27, %c0_28] : memref<2x32x256xf32, #tpu.memory_space<vmem>>, vector<1x32x256xf32>
    %46 = vector.shape_cast %45 : vector<1x32x256xf32> to vector<32x256xf32>
    %47 = vector.shape_cast %44 : vector<32x256xf32> to vector<1x32x256xf32>
    tpu.vector_store %arg6[%c1_26, %c0_27, %c0_28], %47 {strides = array<i32>} : memref<2x32x256xf32, #tpu.memory_space<vmem>>, vector<1x32x256xf32>,
    return
  }
  func.func @transform_0(%arg0: i32) -> (i32, i32, i32) {
    %c0_i32 = arith.constant 0 : i32
    %c0_i32_0 = arith.constant 0 : i32
    %c0_i32_1 = arith.constant 0 : i32
    return %arg0, %c0_i32, %c0_i32_0 : i32, i32, i32
  }
  func.func @transform_1(%arg0: i32) -> (i32, i32) {
    %c0_i32 = arith.constant 0 : i32
    %c0_i32_0 = arith.constant 0 : i32
    %c0_i32_1 = arith.constant 0 : i32
    return %c0_i32, %c0_i32_0 : i32, i32
  }
  func.func @transform_2(%arg0: i32) -> (i32, i32) {
    %c0_i32 = arith.constant 0 : i32
    %c0_i32_0 = arith.constant 0 : i32
    %c0_i32_1 = arith.constant 0 : i32
    return %c0_i32, %c0_i32_0 : i32, i32
  }
  func.func @transform_3(%arg0: i32) -> (i32, i32) {
    %c0_i32 = arith.constant 0 : i32
    %c0_i32_0 = arith.constant 0 : i32
    %c0_i32_1 = arith.constant 0 : i32
    return %c0_i32, %c0_i32_0 : i32, i32
  }
  func.func @transform_4(%arg0: i32) -> (i32, i32) {
    %c0_i32 = arith.constant 0 : i32
    %c0_i32_0 = arith.constant 0 : i32
    %c0_i32_1 = arith.constant 0 : i32
    return %c0_i32, %c0_i32_0 : i32, i32
  }
  func.func @transform_5(%arg0: i32) -> (i32, i32, i32) {
    %c0_i32 = arith.constant 0 : i32
    %c0_i32_0 = arith.constant 0 : i32
    %c0_i32_1 = arith.constant 0 : i32
    return %arg0, %c0_i32, %c0_i32_0 : i32, i32, i32
  }
}

</mosaic_0001>

<llo_original>
// kernel: tpu_custom_call.1
$region0: #{tpu_custom_call.1}
  #allocation0 [shape = 'u32[]', space=smem, size = 0x4, offset = 0x4, fixed_abs, tag = 'smem constant byte address 0x4 - core index']
  #allocation1 [shape = 'u32[72,128]{1,0:T(1,128)}', space=vmem, size = 0x9000, scoped, tag = 'internal scratch']
  %s0 = inlined_call_operand.hbm [shape: f32[2,32,256], index: 0, kind: input, shape index: {}]
  %s1 = inlined_call_operand.vmem [shape: f32[4,32], index: 1, kind: input, shape index: {}]
  %s2 = inlined_call_operand.vmem [shape: f32[4,1], index: 2, kind: input, shape index: {}]
  %s3 = inlined_call_operand.vmem [shape: f32[32,4], index: 3, kind: input, shape index: {}]
  %s4 = inlined_call_operand.vmem [shape: f32[32,1], index: 4, kind: input, shape index: {}]
  %s5 = inlined_call_operand.hbm [shape: f32[2,32,256], index: 5, kind: output, shape index: {}]
  %s6 = sld [smem:[#allocation0]]
  $region34: #{tpu_custom_call.1} parent=0
    _
  %s8 = ssub.s32 1, %s6
  %s9 = scalar_select 0, %s8, %s6
  $region1: #{tpu_custom_call.1} parent=0
    #allocation2 [shape = 'u8[65536]{0}', space=vmem, size = 0x10000, scoped, tag = 'input window, operand 0, single buffered']
    #allocation3 [shape = 's32[1]{0}', space=sflag, size = 0x4, scoped, tag = 'scoped memory for tpu_custom_call.1']
    #allocation4 [shape = 's32[1]{0}', space=sflag, size = 0x4, scoped, tag = 'scoped memory for tpu_custom_call.1']
    #allocation5 [shape = 'u8[65536]{0}', space=vmem, size = 0x10000, scoped, tag = 'output window, operand 0, single buffered']
    %10 = vsyncpa [#allocation3], 0
    %11 = vsyncpa [#allocation4], 0
    // Predicated region
    $region2: #{tpu_custom_call.1} parent=1 // pred_check
      _
    $region3: #{tpu_custom_call.1} parent=1 // pred_check_branch
      %13 = sbr.rel (0) target = $region5
    $region4: #{tpu_custom_call.1} parent=1 // pred_region
      %15 = vsyncadd [#allocation3], 0
      %s16 = sshll.u32 %s0, 4
      %s17 = int_to_ptr.hbm [resolvable:$true] %s16
      %s18 = sshll.u32 [#allocation2], 4
      %s19 = int_to_ptr.vmem [resolvable:$true] %s18
      %24 = dma.hbm_to_vmem [thread:$0]  %s17, 2048, %s19, [#allocation3], 256, 256, 16
    $region5: #{tpu_custom_call.1} parent=1 // pred_fallthru
      _
    // Predicated region
    $region6: #{tpu_custom_call.1} parent=1 // pred_check
      _
    $region7: #{tpu_custom_call.1} parent=1 // pred_check_branch
      %26 = sbr.rel (0) target = $region9
    $region8: #{tpu_custom_call.1} parent=1 // pred_region
      _
    $region9: #{tpu_custom_call.1} parent=1 // pred_fallthru
      _
    // Predicated region
    $region10: #{tpu_custom_call.1} parent=1 // pred_check
      _
    $region11: #{tpu_custom_call.1} parent=1 // pred_check_branch
      %28 = sbr.rel (0) target = $region13
    $region12: #{tpu_custom_call.1} parent=1 // pred_region
      _
    $region13: #{tpu_custom_call.1} parent=1 // pred_fallthru
      _
    // Predicated region
    $region14: #{tpu_custom_call.1} parent=1 // pred_check
      _
    $region15: #{tpu_custom_call.1} parent=1 // pred_check_branch
      %30 = sbr.rel (0) target = $region17
    $region16: #{tpu_custom_call.1} parent=1 // pred_region
      _
    $region17: #{tpu_custom_call.1} parent=1 // pred_fallthru
      _
    // Predicated region
    $region18: #{tpu_custom_call.1} parent=1 // pred_check
      _
    $region19: #{tpu_custom_call.1} parent=1 // pred_check_branch
      %32 = sbr.rel (0) target = $region21
    $region20: #{tpu_custom_call.1} parent=1 // pred_region
      _
    $region21: #{tpu_custom_call.1} parent=1 // pred_fallthru
      _
    // Predicated region
    $region22: #{tpu_custom_call.1} parent=1 // pred_check
      _
    $region23: #{tpu_custom_call.1} parent=1 // pred_check_branch
      %34 = sbr.rel (0) target = $region25
    $region24: #{tpu_custom_call.1} parent=1 // pred_region
      %36 = dma.done [#allocation3], 2048
    $region25: #{tpu_custom_call.1} parent=1 // pred_fallthru
      _
    %v37 = vld [vmem:[%s1] sm:$0xf]
    %v38 = vld [vmem:[%s2] sm:$0xf]
    %v39 = vld [vmem:[%s3] sm:$0xff]
    %v40 = vld [vmem:[%s3 + $0x8] sm:$0xff]
    %v41 = vld [vmem:[%s3 + $0x10] sm:$0xff]
    %v42 = vld [vmem:[%s3 + $0x18] sm:$0xff]
    %v43 = vld [vmem:[%s4] sm:$0xff]
    %v44 = vld [vmem:[%s4 + $0x8] sm:$0xff]
    %v45 = vld [vmem:[%s4 + $0x10] sm:$0xff]
    %v46 = vld [vmem:[%s4 + $0x18] sm:$0xff]
    %v47 = vld [vmem:[#allocation2] sm:$0xff]
    %v48 = vld [vmem:[#allocation2 + $0x8] sm:$0xff]
    %v49 = vld [vmem:[#allocation2 + $0x10] sm:$0xff]
    %v50 = vld [vmem:[#allocation2 + $0x18] sm:$0xff]
    %v51 = vld [vmem:[#allocation2 + $0x20] sm:$0xff]
    %v52 = vld [vmem:[#allocation2 + $0x28] sm:$0xff]
    %v53 = vld [vmem:[#allocation2 + $0x30] sm:$0xff]
    %v54 = vld [vmem:[#allocation2 + $0x38] sm:$0xff]
    %v55 = vadd.f32 %v47, %v48
    %56 = vadd.xlane.f32.xlu0 %v55
    %v57 = vpop.xlane.xlu0 %56
    %v58 = vadd.f32 %v49, %v50
    %59 = vadd.xlane.f32.xlu0 %v58
    %v60 = vpop.xlane.xlu0 %59
    %v61 = vadd.f32 %v51, %v52
    %62 = vadd.xlane.f32.xlu0 %v61
    %v63 = vpop.xlane.xlu0 %62
    %v64 = vadd.f32 %v53, %v54
    %65 = vadd.xlane.f32.xlu0 %v64
    %v66 = vpop.xlane.xlu0 %65
    %v67 = vmul.f32 %v57, 0.00390625
    %v68 = vmul.f32 %v60, 0.00390625
    %v69 = vmul.f32 %v63, 0.00390625
    %v70 = vmul.f32 %v66, 0.00390625
    %vm71 = vcmask 261120
    %v73 = vsel %vm71, %v37, 0
    %75 = vmatpush.msra.mxu0 0.0
    %76 = vmatpush.msra.mxu0 0.0
    %77 = vmatpush.msra.mxu0 0.0
    %78 = vmatpush.msra.mxu0 0.0
    %79 = vmatpush.msra.mxu0 0.0
    %80 = vmatpush.msra.mxu0 0.0
    %81 = vmatpush.msra.mxu0 0.0
    %82 = vmatpush.msra.mxu0 0.0
    %83 = vmatpush.msra.mxu0 0.0
    %84 = vmatpush.msra.mxu0 0.0
    %85 = vmatpush.msra.mxu0 0.0
    %86 = vmatpush.msra.mxu0 0.0
    %87 = vmatpush.msra.mxu0 %v70
    %88 = vmatpush.msra.mxu0 %v69
    %89 = vmatpush.msra.mxu0 %v68
    %90 = vmatpush.msra.mxu0 %v67
    %91 = vmatmul.f32.gmra.mxu0 %v73
    %v92 = vpop.f32.mrf.mxu0
    %v93 = vadd.f32 %v38, %v92
    %94 = vdwg.mxu0
    %v95 = vmax.f32 %v93, 0.0
    %vm96 = vcmask 31744
    %v98 = vsel %vm96, %v39, 0
    %v101 = vsel %vm96, %v40, 0
    %v104 = vsel %vm96, %v41, 0
    %v107 = vsel %vm96, %v42, 0
    %vm109 = vcmask 1043456
    %v111 = vsel %vm109, %v95, 0
    %113 = vmatpush.msra.mxu0 0.0
    %114 = vmatpush.msra.mxu0 0.0
    %115 = vmatpush.msra.mxu0 0.0
    %116 = vmatpush.msra.mxu0 0.0
    %117 = vmatpush.msra.mxu0 0.0
    %118 = vmatpush.msra.mxu0 0.0
    %119 = vmatpush.msra.mxu0 0.0
    %120 = vmatpush.msra.mxu0 0.0
    %121 = vmatpush.msra.mxu0 0.0
    %122 = vmatpush.msra.mxu0 0.0
    %123 = vmatpush.msra.mxu0 0.0
    %124 = vmatpush.msra.mxu0 0.0
    %125 = vmatpush.msra.mxu0 0.0
    %126 = vmatpush.msra.mxu0 0.0
    %127 = vmatpush.msra.mxu0 0.0
    %128 = vmatpush.msra.mxu0 %v111
    %129 = vmatmul.f32.gmra.mxu0 %v98
    %v130 = vpop.f32.mrf.mxu0
    %v131 = vadd.f32 %v43, %v130
    %132 = vmatmul.f32.gmra.mxu0 %v101
    %v133 = vpop.f32.mrf.mxu0
    %v134 = vadd.f32 %v44, %v133
    %135 = vmatmul.f32.gmra.mxu0 %v104
    %v136 = vpop.f32.mrf.mxu0
    %v137 = vadd.f32 %v45, %v136
    %138 = vmatmul.f32.gmra.mxu0 %v107
    %v139 = vpop.f32.mrf.mxu0
    %v140 = vadd.f32 %v46, %v139
    %141 = vdwg.mxu0
    %v142 = vxor.u32 %v131, 2147483648
    %v143 = vxor.u32 %v134, 2147483648
    %v144 = vxor.u32 %v137, 2147483648
    %v145 = vxor.u32 %v140, 2147483648
    %v146 = vmul.f32 %v142, 1.442695
    %v147 = vpow.pop %v146
    %v148 = vmul.f32 %v143, 1.442695
    %v149 = vpow.pop %v148
    %v150 = vmul.f32 %v144, 1.442695
    %v151 = vpow.pop %v150
    %v152 = vmul.f32 %v145, 1.442695
    %v153 = vpow.pop %v152
    %v154 = vadd.f32 %v147, 1.0
    %v155 = vadd.f32 %v149, 1.0
    %v156 = vadd.f32 %v151, 1.0
    %v157 = vadd.f32 %v153, 1.0
    %v158 = vrcp.pop %v154
    %v159 = vmul.f32 %v154, %v158
    %v160 = vsub.f32 1.0, %v159
    %v161 = vmul.f32 %v158, %v160
    %v162 = vadd.f32 %v158, %v161
    %vm163 = vweird.f32 %v154
    %vm164 = vweird.f32 %v158
    %vm165 = vmor %vm163, %vm164
    %v166 = vsel %vm165, %v158, %v162
    %v167 = vand.u32 2147483647, %v154
    %vm168 = vcmp.eq.f32.partialorder %v167, 8.507059e+37
    %v169 = vand.u32 %v154, 2147483648
    %v170 = vor.u32 1.1754944e-38, %v169
    %v171 = vsel %vm168, %v170, %v166
    %v172 = vmul.f32 1.0, %v171
    %v173 = vrcp.pop %v155
    %v174 = vmul.f32 %v155, %v173
    %v175 = vsub.f32 1.0, %v174
    %v176 = vmul.f32 %v173, %v175
    %v177 = vadd.f32 %v173, %v176
    %vm178 = vweird.f32 %v155
    %vm179 = vweird.f32 %v173
    %vm180 = vmor %vm178, %vm179
    %v181 = vsel %vm180, %v173, %v177
    %v182 = vand.u32 2147483647, %v155
    %vm183 = vcmp.eq.f32.partialorder %v182, 8.507059e+37
    %v184 = vand.u32 %v155, 2147483648
    %v185 = vor.u32 1.1754944e-38, %v184
    %v186 = vsel %vm183, %v185, %v181
    %v187 = vmul.f32 1.0, %v186
    %v188 = vrcp.pop %v156
    %v189 = vmul.f32 %v156, %v188
    %v190 = vsub.f32 1.0, %v189
    %v191 = vmul.f32 %v188, %v190
    %v192 = vadd.f32 %v188, %v191
    %vm193 = vweird.f32 %v156
    %vm194 = vweird.f32 %v188
    %vm195 = vmor %vm193, %vm194
    %v196 = vsel %vm195, %v188, %v192
    %v197 = vand.u32 2147483647, %v156
    %vm198 = vcmp.eq.f32.partialorder %v197, 8.507059e+37
    %v199 = vand.u32 %v156, 2147483648
    %v200 = vor.u32 1.1754944e-38, %v199
    %v201 = vsel %vm198, %v200, %v196
    %v202 = vmul.f32 1.0, %v201
    %v203 = vrcp.pop %v157
    %v204 = vmul.f32 %v157, %v203
    %v205 = vsub.f32 1.0, %v204
    %v206 = vmul.f32 %v203, %v205
    %v207 = vadd.f32 %v203, %v206
    %vm208 = vweird.f32 %v157
    %vm209 = vweird.f32 %v203
    %vm210 = vmor %vm208, %vm209
    %v211 = vsel %vm210, %v203, %v207
    %v212 = vand.u32 2147483647, %v157
    %vm213 = vcmp.eq.f32.partialorder %v212, 8.507059e+37
    %v214 = vand.u32 %v157, 2147483648
    %v215 = vor.u32 1.1754944e-38, %v214
    %v216 = vsel %vm213, %v215, %v211
    %v217 = vmul.f32 1.0, %v216
    %219 = vset.pattern.permute.xlu0 0
    %220 = vperm.xlu0 %219, %v172
    %v221 = vpop.permute.xlu0 %220
    %224 = vset.pattern.permute.xlu0 0
    %225 = vperm.xlu0 %224, %v187
    %v226 = vpop.permute.xlu0 %225
    %229 = vset.pattern.permute.xlu0 0
    %230 = vperm.xlu0 %229, %v202
    %v231 = vpop.permute.xlu0 %230
    %234 = vset.pattern.permute.xlu0 0
    %235 = vperm.xlu0 %234, %v217
    %v236 = vpop.permute.xlu0 %235
    %v238 = vmul.f32 %v47, %v221
    %v239 = vmul.f32 %v48, %v221
    %v240 = vmul.f32 %v49, %v226
    %v241 = vmul.f32 %v50, %v226
    %v242 = vmul.f32 %v51, %v231
    %v243 = vmul.f32 %v52, %v231
    %v244 = vmul.f32 %v53, %v236
    %v245 = vmul.f32 %v54, %v236
    %246 = vst [vmem:[#allocation5] sm:$0xff] %v238
    %247 = vst [vmem:[#allocation5 + $0x8] sm:$0xff] %v239
    %248 = vst [vmem:[#allocation5 + $0x10] sm:$0xff] %v240
    %249 = vst [vmem:[#allocation5 + $0x18] sm:$0xff] %v241
    %250 = vst [vmem:[#allocation5 + $0x20] sm:$0xff] %v242
    %251 = vst [vmem:[#allocation5 + $0x28] sm:$0xff] %v243
    %252 = vst [vmem:[#allocation5 + $0x30] sm:$0xff] %v244
    %253 = vst [vmem:[#allocation5 + $0x38] sm:$0xff] %v245
    %s254 = scalar_lea.vmem [#allocation2], 64
    %v255 = vld [vmem:[%s254] sm:$0xff]
    %v256 = vld [vmem:[%s254 + $0x8] sm:$0xff]
    %v257 = vld [vmem:[%s254 + $0x10] sm:$0xff]
    %v258 = vld [vmem:[%s254 + $0x18] sm:$0xff]
    %v259 = vld [vmem:[%s254 + $0x20] sm:$0xff]
    %v260 = vld [vmem:[%s254 + $0x28] sm:$0xff]
    %v261 = vld [vmem:[%s254 + $0x30] sm:$0xff]
    %v262 = vld [vmem:[%s254 + $0x38] sm:$0xff]
    %v263 = vadd.f32 %v255, %v256
    %264 = vadd.xlane.f32.xlu0 %v263
    %v265 = vpop.xlane.xlu0 %264
    %v266 = vadd.f32 %v257, %v258
    %267 = vadd.xlane.f32.xlu0 %v266
    %v268 = vpop.xlane.xlu0 %267
    %v269 = vadd.f32 %v259, %v260
    %270 = vadd.xlane.f32.xlu0 %v269
    %v271 = vpop.xlane.xlu0 %270
    %v272 = vadd.f32 %v261, %v262
    %273 = vadd.xlane.f32.xlu0 %v272
    %v274 = vpop.xlane.xlu0 %273
    %v275 = vmul.f32 %v265, 0.00390625
    %v276 = vmul.f32 %v268, 0.00390625
    %v277 = vmul.f32 %v271, 0.00390625
    %v278 = vmul.f32 %v274, 0.00390625
    %279 = vmatpush.msra.mxu0 0.0
    %280 = vmatpush.msra.mxu0 0.0
    %281 = vmatpush.msra.mxu0 0.0
    %282 = vmatpush.msra.mxu0 0.0
    %283 = vmatpush.msra.mxu0 0.0
    %284 = vmatpush.msra.mxu0 0.0
    %285 = vmatpush.msra.mxu0 0.0
    %286 = vmatpush.msra.mxu0 0.0
    %287 = vmatpush.msra.mxu0 0.0
    %288 = vmatpush.msra.mxu0 0.0
    %289 = vmatpush.msra.mxu0 0.0
    %290 = vmatpush.msra.mxu0 0.0
    %291 = vmatpush.msra.mxu0 %v278
    %292 = vmatpush.msra.mxu0 %v277
    %293 = vmatpush.msra.mxu0 %v276
    %294 = vmatpush.msra.mxu0 %v275
    %295 = vmatmul.f32.gmra.mxu0 %v73
    %v296 = vpop.f32.mrf.mxu0
    %v297 = vadd.f32 %v38, %v296
    %298 = vdwg.mxu0
    %v299 = vmax.f32 %v297, 0.0
    %v301 = vsel %vm109, %v299, 0
    %303 = vmatpush.msra.mxu0 0.0
    %304 = vmatpush.msra.mxu0 0.0
    %305 = vmatpush.msra.mxu0 0.0
    %306 = vmatpush.msra.mxu0 0.0
    %307 = vmatpush.msra.mxu0 0.0
    %308 = vmatpush.msra.mxu0 0.0
    %309 = vmatpush.msra.mxu0 0.0
    %310 = vmatpush.msra.mxu0 0.0
    %311 = vmatpush.msra.mxu0 0.0
    %312 = vmatpush.msra.mxu0 0.0
    %313 = vmatpush.msra.mxu0 0.0
    %314 = vmatpush.msra.mxu0 0.0
    %315 = vmatpush.msra.mxu0 0.0
    %316 = vmatpush.msra.mxu0 0.0
    %317 = vmatpush.msra.mxu0 0.0
    %318 = vmatpush.msra.mxu0 %v301
    %319 = vmatmul.f32.gmra.mxu0 %v98
    %v320 = vpop.f32.mrf.mxu0
    %v321 = vadd.f32 %v43, %v320
    %322 = vmatmul.f32.gmra.mxu0 %v101
    %v323 = vpop.f32.mrf.mxu0
    %v324 = vadd.f32 %v44, %v323
    %325 = vmatmul.f32.gmra.mxu0 %v104
    %v326 = vpop.f32.mrf.mxu0
    %v327 = vadd.f32 %v45, %v326
    %328 = vmatmul.f32.gmra.mxu0 %v107
    %v329 = vpop.f32.mrf.mxu0
    %v330 = vadd.f32 %v46, %v329
    %331 = vdwg.mxu0
    %v332 = vxor.u32 %v321, 2147483648
    %v333 = vxor.u32 %v324, 2147483648
    %v334 = vxor.u32 %v327, 2147483648
    %v335 = vxor.u32 %v330, 2147483648
    %v336 = vmul.f32 %v332, 1.442695
    %v337 = vpow.pop %v336
    %v338 = vmul.f32 %v333, 1.442695
    %v339 = vpow.pop %v338
    %v340 = vmul.f32 %v334, 1.442695
    %v341 = vpow.pop %v340
    %v342 = vmul.f32 %v335, 1.442695
    %v343 = vpow.pop %v342
    %v344 = vadd.f32 %v337, 1.0
    %v345 = vadd.f32 %v339, 1.0
    %v346 = vadd.f32 %v341, 1.0
    %v347 = vadd.f32 %v343, 1.0
    %v348 = vrcp.pop %v344
    %v349 = vmul.f32 %v344, %v348
    %v350 = vsub.f32 1.0, %v349
    %v351 = vmul.f32 %v348, %v350
    %v352 = vadd.f32 %v348, %v351
    %vm353 = vweird.f32 %v344
    %vm354 = vweird.f32 %v348
    %vm355 = vmor %vm353, %vm354
    %v356 = vsel %vm355, %v348, %v352
    %v357 = vand.u32 2147483647, %v344
    %vm358 = vcmp.eq.f32.partialorder %v357, 8.507059e+37
    %v359 = vand.u32 %v344, 2147483648
    %v360 = vor.u32 1.1754944e-38, %v359
    %v361 = vsel %vm358, %v360, %v356
    %v362 = vmul.f32 1.0, %v361
    %v363 = vrcp.pop %v345
    %v364 = vmul.f32 %v345, %v363
    %v365 = vsub.f32 1.0, %v364
    %v366 = vmul.f32 %v363, %v365
    %v367 = vadd.f32 %v363, %v366
    %vm368 = vweird.f32 %v345
    %vm369 = vweird.f32 %v363
    %vm370 = vmor %vm368, %vm369
    %v371 = vsel %vm370, %v363, %v367
    %v372 = vand.u32 2147483647, %v345
    %vm373 = vcmp.eq.f32.partialorder %v372, 8.507059e+37
    %v374 = vand.u32 %v345, 2147483648
    %v375 = vor.u32 1.1754944e-38, %v374
    %v376 = vsel %vm373, %v375, %v371
    %v377 = vmul.f32 1.0, %v376
    %v378 = vrcp.pop %v346
    %v379 = vmul.f32 %v346, %v378
    %v380 = vsub.f32 1.0, %v379
    %v381 = vmul.f32 %v378, %v380
    %v382 = vadd.f32 %v378, %v381
    %vm383 = vweird.f32 %v346
    %vm384 = vweird.f32 %v378
    %vm385 = vmor %vm383, %vm384
    %v386 = vsel %vm385, %v378, %v382
    %v387 = vand.u32 2147483647, %v346
    %vm388 = vcmp.eq.f32.partialorder %v387, 8.507059e+37
    %v389 = vand.u32 %v346, 2147483648
    %v390 = vor.u32 1.1754944e-38, %v389
    %v391 = vsel %vm388, %v390, %v386
    %v392 = vmul.f32 1.0, %v391
    %v393 = vrcp.pop %v347
    %v394 = vmul.f32 %v347, %v393
    %v395 = vsub.f32 1.0, %v394
    %v396 = vmul.f32 %v393, %v395
    %v397 = vadd.f32 %v393, %v396
    %vm398 = vweird.f32 %v347
    %vm399 = vweird.f32 %v393
    %vm400 = vmor %vm398, %vm399
    %v401 = vsel %vm400, %v393, %v397
    %v402 = vand.u32 2147483647, %v347
    %vm403 = vcmp.eq.f32.partialorder %v402, 8.507059e+37
    %v404 = vand.u32 %v347, 2147483648
    %v405 = vor.u32 1.1754944e-38, %v404
    %v406 = vsel %vm403, %v405, %v401
    %v407 = vmul.f32 1.0, %v406
    %409 = vset.pattern.permute.xlu0 0
    %410 = vperm.xlu0 %409, %v362
    %v411 = vpop.permute.xlu0 %410
    %414 = vset.pattern.permute.xlu0 0
    %415 = vperm.xlu0 %414, %v377
    %v416 = vpop.permute.xlu0 %415
    %419 = vset.pattern.permute.xlu0 0
    %420 = vperm.xlu0 %419, %v392
    %v421 = vpop.permute.xlu0 %420
    %424 = vset.pattern.permute.xlu0 0
    %425 = vperm.xlu0 %424, %v407
    %v426 = vpop.permute.xlu0 %425
    %v428 = vmul.f32 %v255, %v411
    %v429 = vmul.f32 %v256, %v411
    %v430 = vmul.f32 %v257, %v416
    %v431 = vmul.f32 %v258, %v416
    %v432 = vmul.f32 %v259, %v421
    %v433 = vmul.f32 %v260, %v421
    %v434 = vmul.f32 %v261, %v426
    %v435 = vmul.f32 %v262, %v426
    %s436 = scalar_lea.vmem [#allocation5], 64
    %437 = vst [vmem:[%s436] sm:$0xff] %v428
    %438 = vst [vmem:[%s436 + $0x8] sm:$0xff] %v429
    %439 = vst [vmem:[%s436 + $0x10] sm:$0xff] %v430
    %440 = vst [vmem:[%s436 + $0x18] sm:$0xff] %v431
    %441 = vst [vmem:[%s436 + $0x20] sm:$0xff] %v432
    %442 = vst [vmem:[%s436 + $0x28] sm:$0xff] %v433
    %443 = vst [vmem:[%s436 + $0x30] sm:$0xff] %v434
    %444 = vst [vmem:[%s436 + $0x38] sm:$0xff] %v435
    // Predicated region
    $region26: #{tpu_custom_call.1} parent=1 // pred_check
      _
    $region27: #{tpu_custom_call.1} parent=1 // pred_check_branch
      %446 = sbr.rel (0) target = $region29
    $region28: #{tpu_custom_call.1} parent=1 // pred_region
      %448 = vsyncadd [#allocation4], 0
      %s449 = sshll.u32 [#allocation5], 4
      %s450 = int_to_ptr.vmem [resolvable:$true] %s449
      %s451 = sshll.u32 %s5, 4
      %s452 = int_to_ptr.hbm [resolvable:$true] %s451
      %457 = dma.vmem_to_hbm [thread:$0]  %s450, 2048, %s452, [#allocation4], 256, 256, 16
    $region29: #{tpu_custom_call.1} parent=1 // pred_fallthru
      _
    // Predicated region
    $region30: #{tpu_custom_call.1} parent=1 // pred_check
      _
    $region31: #{tpu_custom_call.1} parent=1 // pred_check_branch
      %459 = sbr.rel (0) target = $region33
    $region32: #{tpu_custom_call.1} parent=1 // pred_region
      %461 = dma.done [#allocation4], 2048
    $region33: #{tpu_custom_call.1} parent=1 // pred_fallthru
      _
    %462 = vsyncpa [#allocation3], 1
    %463 = vsyncpa [#allocation4], 1

</llo_original>
